<compile_context>
chip_gen: v7x
topology: tpu7x:2x2x1
jax: 0.10.0
libtpu: 0.0.40
codegen_flags: <defaults>
</compile_context>

<pallas_src>
import functools
import math

import jax
import jax.numpy as jnp
from jax import lax
from jax.experimental import pallas as pl
from jax.experimental.pallas import tpu as pltpu

_NEG = -1e30  # large-negative stand-in for -inf (avoids inf-inf NaNs)


def _cluster_memory_kernel(x_ref, ft_ref, tgt_ref, out_ref,
                           xn_ref, m_ref, l_ref, s_ref, tacc_ref, m2_ref, l2_ref, *,
                           batch_size, num_samples, epsilon, inv_temp1, inv_temp2,
                           margin, apply_margin, symmetric, lamn):
    i = pl.program_id(0)          # B-tile index  ("parallel")
    n = pl.program_id(1)          # N-tile index  ("arbitrary", streamed)
    tb = x_ref.shape[0]
    tn = ft_ref.shape[1]

    @pl.when(n == 0)
    def _init():
        # F.normalize(inputs, dim=1), computed once per B-tile in f32, cached in VMEM.
        x = x_ref[...].astype(jnp.float32)
        norm = jnp.sqrt(jnp.sum(x * x, axis=1, keepdims=True))
        xn_ref[...] = (x / jnp.maximum(norm, 1e-12)).astype(xn_ref.dtype)
        m_ref[...] = jnp.full((tb, 1), _NEG, jnp.float32)
        l_ref[...] = jnp.zeros((tb, 1), jnp.float32)
        s_ref[...] = jnp.zeros((tb, 1), jnp.float32)
        tacc_ref[...] = jnp.zeros((tb, 1), jnp.float32)
        m2_ref[...] = jnp.full((tb, 1), _NEG, jnp.float32)
        l2_ref[...] = jnp.zeros((tb, 1), jnp.float32)

    # (tb, tn) raw similarity tile on the MXU; features pre-transposed -> no vxpose.
    logits = jnp.dot(xn_ref[...], ft_ref[...], preferred_element_type=jnp.float32)

    col = n * tn + lax.broadcasted_iota(jnp.int32, (tb, tn), 1)
    valid = col < num_samples                 # masks padded cluster columns
    is_tgt = col == tgt_ref[...]              # one-hot restricted to this tile

    # Raw target logit (exactly one matching column over the whole N sweep).
    tacc_ref[...] += jnp.sum(jnp.where(is_tgt, logits, 0.0), axis=1, keepdims=True)

    # ---- label-smoothed CE statistics (temp1 pass, optional AM margin) ------------
    scaled = logits * inv_temp1
    if apply_margin:
        scaled = scaled - jnp.where(is_tgt, margin * inv_temp1, 0.0)
    sv = jnp.where(valid, scaled, _NEG)
    m_new = jnp.maximum(m_ref[...], jnp.max(sv, axis=1, keepdims=True))
    p = jnp.where(valid, jnp.exp(sv - m_new), 0.0)
    l_ref[...] = jnp.exp(m_ref[...] - m_new) * l_ref[...] + jnp.sum(p, axis=1, keepdims=True)
    s_ref[...] += jnp.sum(jnp.where(valid, scaled, 0.0), axis=1, keepdims=True)
    m_ref[...] = m_new

    # ---- symmetric term only needs logsumexp(logits / temp2) per row --------------
    if symmetric:
        s2v = jnp.where(valid, logits * inv_temp2, _NEG)
        m2_new = jnp.maximum(m2_ref[...], jnp.max(s2v, axis=1, keepdims=True))
        p2 = jnp.where(valid, jnp.exp(s2v - m2_new), 0.0)
        l2_ref[...] = (jnp.exp(m2_ref[...] - m2_new) * l2_ref[...]
                       + jnp.sum(p2, axis=1, keepdims=True))
        m2_ref[...] = m2_new

    @pl.when(n == pl.num_programs(1) - 1)
    def _finalize():
        lse = m_ref[...] + jnp.log(l_ref[...])                # logsumexp(logits/temp1 [- margin])
        t_raw = tacc_ref[...]
        t_scaled = (t_raw - (margin if apply_margin else 0.0)) * inv_temp1
        nf = float(num_samples)
        per_row = ((1.0 - epsilon) * (lse - t_scaled)
                   + (epsilon / nf) * (nf * lse - s_ref[...]))
        if symmetric:
            lse2 = m2_ref[...] + jnp.log(l2_ref[...])
            softfc_tgt = jnp.exp(t_raw * inv_temp2 - lse2)     # softmax(outputs/temp2)[b, target]
            log_const = math.log(nf - 1.0 + math.e)            # logsumexp of a one-hot row
            per_row = per_row + lamn * (log_const - softfc_tgt)
        row = i * tb + lax.broadcasted_iota(jnp.int32, (tb, 1), 0)
        out_ref[...] = jnp.where(row < batch_size, per_row, 0.0)   # mask padded batch rows


def cluster_memory_forward(inputs, targets, features, *, temp1, temp2=None,
                           epsilon=0.1, m=0.0, am=True, metatrain=False,
                           symmetric=False, lamn=0.5,
                           block_b=128, block_n=512, compute_dtype=None):
    """JAX wrapper mirroring ClusterMemory.forward (loss scalar)."""
    B, D = inputs.shape
    N, D2 = features.shape
    assert D == D2
    cdt = jnp.dtype(compute_dtype) if compute_dtype is not None else inputs.dtype

    # --- batch tiling (padded rows masked in-kernel) ---
    if B <= block_b:
        tb, b_pad = B, B
    else:
        tb = block_b
        b_pad = pl.cdiv(B, tb) * tb
    gb = b_pad // tb

    # --- cluster tiling (padded columns masked in-kernel) ---
    if N <= block_n:
        tn, n_pad = N, N
    else:
        tn = block_n
        n_pad = pl.cdiv(N, tn) * tn
    gn = n_pad // tn

    x = inputs.astype(cdt)
    ft = features.astype(cdt).T                        # (D, N): K on sublanes, clusters on lanes
    tgt = targets.astype(jnp.int32).reshape(B, 1)
    if b_pad > B:
        x = jnp.pad(x, ((0, b_pad - B), (0, 0)))
        tgt = jnp.pad(tgt, ((0, b_pad - B), (0, 0)))
    if n_pad > N:
        ft = jnp.pad(ft, ((0, 0), (0, n_pad - N)))

    apply_margin = bool(metatrain) and bool(am) and float(m) != 0.0
    kernel = functools.partial(
        _cluster_memory_kernel,
        batch_size=B, num_samples=N, epsilon=float(epsilon),
        inv_temp1=1.0 / float(temp1),
        inv_temp2=(1.0 / float(temp2)) if temp2 is not None else 1.0,
        margin=float(m), apply_margin=apply_margin,
        symmetric=bool(symmetric), lamn=float(lamn))

    # VMEM budget check (tiles are double-buffered by the pipeline).
    itemsize = jnp.dtype(cdt).itemsize
    vmem_est = (2 * D * tn * itemsize          # feature tiles (double buffered)
                + 2 * tb * D * itemsize        # input tile
                + tb * D * itemsize            # normalized-input scratch
                + 8 * tb * 128 * 4)            # per-row scalar scratch (lane padded)
    vmem_limit = None if vmem_est < (24 << 20) else int(vmem_est * 3 // 2) + (4 << 20)

    per_row = pl.pallas_call(
        kernel,
        out_shape=jax.ShapeDtypeStruct((b_pad, 1), jnp.float32),
        grid_spec=pltpu.PrefetchScalarGridSpec(
            num_scalar_prefetch=0,
            grid=(gb, gn),
            in_specs=[
                pl.BlockSpec((tb, D), lambda i, n: (i, 0)),   # inputs  (resident per B-tile)
                pl.BlockSpec((D, tn), lambda i, n: (0, n)),   # features.T, streamed over N
                pl.BlockSpec((tb, 1), lambda i, n: (i, 0)),   # targets (tiny int32 column)
            ],
            out_specs=pl.BlockSpec((tb, 1), lambda i, n: (i, 0)),
            scratch_shapes=[
                pltpu.VMEM((tb, D), cdt),            # normalized inputs
                pltpu.VMEM((tb, 1), jnp.float32),    # running max     (temp1 pass)
                pltpu.VMEM((tb, 1), jnp.float32),    # running sum-exp (temp1 pass)
                pltpu.VMEM((tb, 1), jnp.float32),    # running sum of scaled logits
                pltpu.VMEM((tb, 1), jnp.float32),    # raw target logit
                pltpu.VMEM((tb, 1), jnp.float32),    # running max     (temp2 pass)
                pltpu.VMEM((tb, 1), jnp.float32),    # running sum-exp (temp2 pass)
            ]),
        compiler_params=pltpu.CompilerParams(
            dimension_semantics=("parallel", "arbitrary"),
            vmem_limit_bytes=vmem_limit),
    )(x, ft, tgt)

    return jnp.sum(per_row) / B


def reference_forward(inputs, targets, features, *, temp1, temp2=None, epsilon=0.1,
                      m=0.0, am=True, metatrain=False, symmetric=False, lamn=0.5):
    """Pure-JAX reference of ClusterMemory.forward (all branches), for correctness checks."""
    N = features.shape[0]
    xn = inputs / jnp.maximum(jnp.linalg.norm(inputs, axis=1, keepdims=True), 1e-12)
    outputs = xn @ features.T
    onehot = jax.nn.one_hot(targets, N, dtype=jnp.float32)
    if metatrain and am:
        logits = (outputs - m * onehot) / temp1
    else:
        logits = outputs / temp1
    log_probs = jax.nn.log_softmax(logits, axis=1)
    smooth = (1.0 - epsilon) * onehot + epsilon / N
    loss = jnp.sum(jnp.mean(-smooth * log_probs, axis=0))
    if symmetric:
        lp2 = jax.nn.log_softmax(onehot, axis=1)
        softfc = jax.nn.softmax(outputs / temp2, axis=1)
        loss = loss + lamn * jnp.mean(-jnp.sum(softfc * lp2, axis=1))
    return loss


# TODO(synk): updateCM (momentum memory-bank update with per-cluster hard / camera-aware
# selection) and the CM/CM_Hard custom backward are stateful / autograd routines outside
# this forward pass; not ported to Pallas here.

if __name__ == "__main__":
    key = jax.random.PRNGKey(0)

    # --- case 1: small single-tile grid, default (softmax CE) path, f32 ---
    B, D, N = 8, 32, 16
    k1, k2, k3 = jax.random.split(key, 3)
    inputs = jax.random.normal(k1, (B, D), dtype=jnp.float32)
    features = jax.random.normal(k2, (N, D), dtype=jnp.float32)
    features = features / jnp.linalg.norm(features, axis=1, keepdims=True)
    targets = jax.random.randint(k3, (B,), 0, N, dtype=jnp.int32)
    temp1 = 0.05

    loss = jax.block_until_ready(
        cluster_memory_forward(inputs, targets, features, temp1=temp1))
    ref = reference_forward(inputs, targets, features, temp1=temp1)
    assert jnp.allclose(loss, ref, rtol=1e-5, atol=1e-5), (loss, ref)

    # --- case 2: real grid over B and N (ragged last N tile + padded B tile),
    #             metatrain + AM margin + symmetric branch, f32 ---
    B2, D2, N2 = 20, 64, 200
    k4, k5, k6 = jax.random.split(jax.random.PRNGKey(1), 3)
    inputs2 = jax.random.normal(k4, (B2, D2), dtype=jnp.float32)
    features2 = jax.random.normal(k5, (N2, D2), dtype=jnp.float32)
    features2 = features2 / jnp.linalg.norm(features2, axis=1, keepdims=True)
    targets2 = jax.random.randint(k6, (B2,), 0, N2, dtype=jnp.int32)
    kw = dict(temp1=0.05, temp2=0.6, m=0.35, am=True,
              metatrain=True, symmetric=True, lamn=0.5)

    loss2 = jax.block_until_ready(
        cluster_memory_forward(inputs2, targets2, features2,
                               block_b=8, block_n=128, **kw))
    ref2 = reference_forward(inputs2, targets2, features2, **kw)
    assert jnp.allclose(loss2, ref2, rtol=1e-4, atol=1e-4), (loss2, ref2)

    # --- case 3: bf16 feed to the MXU (accumulation stays f32 in-kernel) ---
    loss3 = jax.block_until_ready(
        cluster_memory_forward(inputs, targets, features, temp1=temp1,
                               compute_dtype=jnp.bfloat16))
    assert jnp.isfinite(loss3)
    assert jnp.allclose(loss3, ref, rtol=2e-1, atol=2e-1), (loss3, ref)

    print("KERNEL_OK")
</pallas_src>

<mosaic_0001>
module attributes {stable_mosaic.version = 11 : i64} {
  func.func @_cluster_memory_kernel(%arg0: i32, %arg1: i32, %arg2: memref<8x32xf32, #tpu.memory_space<vmem>>, %arg3: memref<32x16xf32, #tpu.memory_space<vmem>>, %arg4: memref<8x1xi32, #tpu.memory_space<vmem>>, %arg5: memref<8x1xf32, #tpu.memory_space<vmem>>, %arg6: memref<8x32xf32, #tpu.memory_space<vmem>>, %arg7: memref<8x1xf32, #tpu.memory_space<vmem>>, %arg8: memref<8x1xf32, #tpu.memory_space<vmem>>, %arg9: memref<8x1xf32, #tpu.memory_space<vmem>>, %arg10: memref<8x1xf32, #tpu.memory_space<vmem>>, %arg11: memref<8x1xf32, #tpu.memory_space<vmem>>, %arg12: memref<8x1xf32, #tpu.memory_space<vmem>>) attributes {dimension_semantics = [#tpu.dimension_semantics<parallel>, #tpu.dimension_semantics<arbitrary>], iteration_bounds = array<i64: 1, 1>, scalar_prefetch = 0 : i64, scratch_operands = 7 : i64, tpu.core_type = #tpu.core_type<tc>, window_params = [{transform_indices = @transform_0, window_bounds = array<i64: 8, 32>}, {transform_indices = @transform_1, window_bounds = array<i64: 32, 16>}, {transform_indices = @transform_2, window_bounds = array<i64: 8, 1>}, {transform_indices = @transform_3, window_bounds = array<i64: 8, 1>}]} {
    %c0_i32 = arith.constant 0 : i32
    %0 = arith.cmpi eq, %arg1, %c0_i32 : i32
    %1 = arith.extui %0 : i1 to i32
    %c0_i32_0 = arith.constant 0 : i32
    %2 = arith.cmpi ne, %1, %c0_i32_0 : i32
    scf.if %2 {
      %c0_36 = arith.constant 0 : index
      %c0_37 = arith.constant 0 : index
      %55 = vector.load %arg2[%c0_36, %c0_37] : memref<8x32xf32, #tpu.memory_space<vmem>>, vector<8x32xf32>
      %56 = arith.mulf %55, %55 : vector<8x32xf32>
      %cst_38 = arith.constant dense<0.000000e+00> : vector<8xf32>
      %57 = vector.multi_reduction <add>, %56, %cst_38 [1] : vector<8x32xf32> to vector<8xf32>
      %58 = vector.shape_cast %57 : vector<8xf32> to vector<8x1xf32>
      %59 = math.sqrt %58 : vector<8x1xf32>
      %cst_39 = arith.constant 9.99999996E-13 : f32
      %60 = vector.broadcast %cst_39 : f32 to vector<8x1xf32>
      %61 = arith.maximumf %59, %60 : vector<8x1xf32>
      %62 = vector.broadcast %61 : vector<8x1xf32> to vector<8x32xf32>
      %63 = arith.divf %55, %62 : vector<8x32xf32>
      %c0_40 = arith.constant 0 : index
      %c0_41 = arith.constant 0 : index
      %64 = vector.load %arg6[%c0_40, %c0_41] : memref<8x32xf32, #tpu.memory_space<vmem>>, vector<8x32xf32>
      tpu.vector_store %arg6[%c0_40, %c0_41], %63 {strides = array<i32>} : memref<8x32xf32, #tpu.memory_space<vmem>>, vector<8x32xf32>,
      %cst_42 = arith.constant -1.000000e+30 : f32
      %65 = vector.broadcast %cst_42 : f32 to vector<8x1xf32>
      %c0_43 = arith.constant 0 : index
      %c0_44 = arith.constant 0 : index
      %66 = vector.load %arg7[%c0_43, %c0_44] : memref<8x1xf32, #tpu.memory_space<vmem>>, vector<8x1xf32>
      tpu.vector_store %arg7[%c0_43, %c0_44], %65 {strides = array<i32>} : memref<8x1xf32, #tpu.memory_space<vmem>>, vector<8x1xf32>,
      %cst_45 = arith.constant 0.000000e+00 : f32
      %67 = vector.broadcast %cst_45 : f32 to vector<8x1xf32>
      %c0_46 = arith.constant 0 : index
      %c0_47 = arith.constant 0 : index
      %68 = vector.load %arg8[%c0_46, %c0_47] : memref<8x1xf32, #tpu.memory_space<vmem>>, vector<8x1xf32>
      tpu.vector_store %arg8[%c0_46, %c0_47], %67 {strides = array<i32>} : memref<8x1xf32, #tpu.memory_space<vmem>>, vector<8x1xf32>,
      %cst_48 = arith.constant 0.000000e+00 : f32
      %69 = vector.broadcast %cst_48 : f32 to vector<8x1xf32>
      %c0_49 = arith.constant 0 : index
      %c0_50 = arith.constant 0 : index
      %70 = vector.load %arg9[%c0_49, %c0_50] : memref<8x1xf32, #tpu.memory_space<vmem>>, vector<8x1xf32>
      tpu.vector_store %arg9[%c0_49, %c0_50], %69 {strides = array<i32>} : memref<8x1xf32, #tpu.memory_space<vmem>>, vector<8x1xf32>,
      %cst_51 = arith.constant 0.000000e+00 : f32
      %71 = vector.broadcast %cst_51 : f32 to vector<8x1xf32>
      %c0_52 = arith.constant 0 : index
      %c0_53 = arith.constant 0 : index
      %72 = vector.load %arg10[%c0_52, %c0_53] : memref<8x1xf32, #tpu.memory_space<vmem>>, vector<8x1xf32>
      tpu.vector_store %arg10[%c0_52, %c0_53], %71 {strides = array<i32>} : memref<8x1xf32, #tpu.memory_space<vmem>>, vector<8x1xf32>,
      %cst_54 = arith.constant -1.000000e+30 : f32
      %73 = vector.broadcast %cst_54 : f32 to vector<8x1xf32>
      %c0_55 = arith.constant 0 : index
      %c0_56 = arith.constant 0 : index
      %74 = vector.load %arg11[%c0_55, %c0_56] : memref<8x1xf32, #tpu.memory_space<vmem>>, vector<8x1xf32>
      tpu.vector_store %arg11[%c0_55, %c0_56], %73 {strides = array<i32>} : memref<8x1xf32, #tpu.memory_space<vmem>>, vector<8x1xf32>,
      %cst_57 = arith.constant 0.000000e+00 : f32
      %75 = vector.broadcast %cst_57 : f32 to vector<8x1xf32>
      %c0_58 = arith.constant 0 : index
      %c0_59 = arith.constant 0 : index
      %76 = vector.load %arg12[%c0_58, %c0_59] : memref<8x1xf32, #tpu.memory_space<vmem>>, vector<8x1xf32>
      tpu.vector_store %arg12[%c0_58, %c0_59], %75 {strides = array<i32>} : memref<8x1xf32, #tpu.memory_space<vmem>>, vector<8x1xf32>,
    } else {
    }
    %c0 = arith.constant 0 : index
    %c0_1 = arith.constant 0 : index
    %3 = vector.load %arg6[%c0, %c0_1] : memref<8x32xf32, #tpu.memory_space<vmem>>, vector<8x32xf32>
    %c0_2 = arith.constant 0 : index
    %c0_3 = arith.constant 0 : index
    %4 = vector.load %arg3[%c0_2, %c0_3] : memref<32x16xf32, #tpu.memory_space<vmem>>, vector<32x16xf32>
    %cst = arith.constant dense<0.000000e+00> : vector<8x16xf32>
    %5 = tpu.matmul %3, %4, %cst {dimension_numbers = #tpu.dot_dimension_numbers<[1], [0], [0], [1], [0, 0, 1, 1], [], []>} : vector<8x32xf32>, vector<32x16xf32>, vector<8x16xf32> -> vector<8x16xf32>
    %c16_i32 = arith.constant 16 : i32
    %6 = arith.muli %arg1, %c16_i32 : i32
    %7 = tpu.iota {dimensions = array<i32: 1>} : vector<8x16xi32>
    %8 = vector.broadcast %6 : i32 to vector<8x16xi32>
    %9 = arith.addi %8, %7 : vector<8x16xi32>
    %c16_i32_4 = arith.constant 16 : i32
    %10 = vector.broadcast %c16_i32_4 : i32 to vector<8x16xi32>
    %11 = arith.cmpi slt, %9, %10 : vector<8x16xi32>
    %c0_5 = arith.constant 0 : index
    %c0_6 = arith.constant 0 : index
    %12 = vector.load %arg4[%c0_5, %c0_6] : memref<8x1xi32, #tpu.memory_space<vmem>>, vector<8x1xi32>
    %13 = vector.broadcast %12 : vector<8x1xi32> to vector<8x16xi32>
    %14 = arith.cmpi eq, %9, %13 : vector<8x16xi32>
    %c0_7 = arith.constant 0 : index
    %c0_8 = arith.constant 0 : index
    %15 = vector.load %arg10[%c0_7, %c0_8] : memref<8x1xf32, #tpu.memory_space<vmem>>, vector<8x1xf32>
    %cst_9 = arith.constant 0.000000e+00 : f32
    %16 = vector.broadcast %cst_9 : f32 to vector<8x16xf32>
    %17 = arith.select %14, %5, %16 : vector<8x16xi1>, vector<8x16xf32>
    %cst_10 = arith.constant dense<0.000000e+00> : vector<8xf32>
    %18 = vector.multi_reduction <add>, %17, %cst_10 [1] : vector<8x16xf32> to vector<8xf32>
    %19 = vector.shape_cast %18 : vector<8xf32> to vector<8x1xf32>
    %20 = arith.addf %15, %19 : vector<8x1xf32>
    %c0_11 = arith.constant 0 : index
    %c0_12 = arith.constant 0 : index
    %21 = vector.load %arg10[%c0_11, %c0_12] : memref<8x1xf32, #tpu.memory_space<vmem>>, vector<8x1xf32>
    tpu.vector_store %arg10[%c0_11, %c0_12], %20 {strides = array<i32>} : memref<8x1xf32, #tpu.memory_space<vmem>>, vector<8x1xf32>,
    %cst_13 = arith.constant 2.000000e+01 : f32
    %22 = vector.broadcast %cst_13 : f32 to vector<8x16xf32>
    %23 = arith.mulf %5, %22 : vector<8x16xf32>
    %cst_14 = arith.constant -1.000000e+30 : f32
    %24 = vector.broadcast %cst_14 : f32 to vector<8x16xf32>
    %25 = arith.select %11, %23, %24 : vector<8x16xi1>, vector<8x16xf32>
    %c0_15 = arith.constant 0 : index
    %c0_16 = arith.constant 0 : index
    %26 = vector.load %arg7[%c0_15, %c0_16] : memref<8x1xf32, #tpu.memory_space<vmem>>, vector<8x1xf32>
    %cst_17 = arith.constant dense<0xFF800000> : vector<8xf32>
    %27 = vector.multi_reduction <maximumf>, %25, %cst_17 [1] : vector<8x16xf32> to vector<8xf32>
    %28 = vector.shape_cast %27 : vector<8xf32> to vector<8x1xf32>
    %29 = arith.maximumf %26, %28 : vector<8x1xf32>
    %30 = vector.broadcast %29 : vector<8x1xf32> to vector<8x16xf32>
    %31 = arith.subf %25, %30 : vector<8x16xf32>
    %32 = math.exp %31 : vector<8x16xf32>
    %cst_18 = arith.constant 0.000000e+00 : f32
    %33 = vector.broadcast %cst_18 : f32 to vector<8x16xf32>
    %34 = arith.select %11, %32, %33 : vector<8x16xi1>, vector<8x16xf32>
    %c0_19 = arith.constant 0 : index
    %c0_20 = arith.constant 0 : index
    %35 = vector.load %arg7[%c0_19, %c0_20] : memref<8x1xf32, #tpu.memory_space<vmem>>, vector<8x1xf32>
    %36 = arith.subf %35, %29 : vector<8x1xf32>
    %37 = math.exp %36 : vector<8x1xf32>
    %c0_21 = arith.constant 0 : index
    %c0_22 = arith.constant 0 : index
    %38 = vector.load %arg8[%c0_21, %c0_22] : memref<8x1xf32, #tpu.memory_space<vmem>>, vector<8x1xf32>
    %39 = arith.mulf %37, %38 : vector<8x1xf32>
    %cst_23 = arith.constant dense<0.000000e+00> : vector<8xf32>
    %40 = vector.multi_reduction <add>, %34, %cst_23 [1] : vector<8x16xf32> to vector<8xf32>
    %41 = vector.shape_cast %40 : vector<8xf32> to vector<8x1xf32>
    %42 = arith.addf %39, %41 : vector<8x1xf32>
    %c0_24 = arith.constant 0 : index
    %c0_25 = arith.constant 0 : index
    %43 = vector.load %arg8[%c0_24, %c0_25] : memref<8x1xf32, #tpu.memory_space<vmem>>, vector<8x1xf32>
    tpu.vector_store %arg8[%c0_24, %c0_25], %42 {strides = array<i32>} : memref<8x1xf32, #tpu.memory_space<vmem>>, vector<8x1xf32>,
    %c0_26 = arith.constant 0 : index
    %c0_27 = arith.constant 0 : index
    %44 = vector.load %arg9[%c0_26, %c0_27] : memref<8x1xf32, #tpu.memory_space<vmem>>, vector<8x1xf32>
    %cst_28 = arith.constant 0.000000e+00 : f32
    %45 = vector.broadcast %cst_28 : f32 to vector<8x16xf32>
    %46 = arith.select %11, %23, %45 : vector<8x16xi1>, vector<8x16xf32>
    %cst_29 = arith.constant dense<0.000000e+00> : vector<8xf32>
    %47 = vector.multi_reduction <add>, %46, %cst_29 [1] : vector<8x16xf32> to vector<8xf32>
    %48 = vector.shape_cast %47 : vector<8xf32> to vector<8x1xf32>
    %49 = arith.addf %44, %48 : vector<8x1xf32>
    %c0_30 = arith.constant 0 : index
    %c0_31 = arith.constant 0 : index
    %50 = vector.load %arg9[%c0_30, %c0_31] : memref<8x1xf32, #tpu.memory_space<vmem>>, vector<8x1xf32>
    tpu.vector_store %arg9[%c0_30, %c0_31], %49 {strides = array<i32>} : memref<8x1xf32, #tpu.memory_space<vmem>>, vector<8x1xf32>,
    %c0_32 = arith.constant 0 : index
    %c0_33 = arith.constant 0 : index
    %51 = vector.load %arg7[%c0_32, %c0_33] : memref<8x1xf32, #tpu.memory_space<vmem>>, vector<8x1xf32>
    tpu.vector_store %arg7[%c0_32, %c0_33], %29 {strides = array<i32>} : memref<8x1xf32, #tpu.memory_space<vmem>>, vector<8x1xf32>,
    %c0_i32_34 = arith.constant 0 : i32
    %52 = arith.cmpi eq, %arg1, %c0_i32_34 : i32
    %53 = arith.extui %52 : i1 to i32
    %c0_i32_35 = arith.constant 0 : i32
    %54 = arith.cmpi ne, %53, %c0_i32_35 : i32
    scf.if %54 {
      %c0_36 = arith.constant 0 : index
      %c0_37 = arith.constant 0 : index
      %55 = vector.load %arg7[%c0_36, %c0_37] : memref<8x1xf32, #tpu.memory_space<vmem>>, vector<8x1xf32>
      %c0_38 = arith.constant 0 : index
      %c0_39 = arith.constant 0 : index
      %56 = vector.load %arg8[%c0_38, %c0_39] : memref<8x1xf32, #tpu.memory_space<vmem>>, vector<8x1xf32>
      %57 = math.log %56 : vector<8x1xf32>
      %58 = arith.addf %55, %57 : vector<8x1xf32>
      %c0_40 = arith.constant 0 : index
      %c0_41 = arith.constant 0 : index
      %59 = vector.load %arg10[%c0_40, %c0_41] : memref<8x1xf32, #tpu.memory_space<vmem>>, vector<8x1xf32>
      %cst_42 = arith.constant 0.000000e+00 : f32
      %60 = vector.broadcast %cst_42 : f32 to vector<8x1xf32>
      %61 = arith.subf %59, %60 : vector<8x1xf32>
      %cst_43 = arith.constant 2.000000e+01 : f32
      %62 = vector.broadcast %cst_43 : f32 to vector<8x1xf32>
      %63 = arith.mulf %61, %62 : vector<8x1xf32>
      %64 = arith.subf %58, %63 : vector<8x1xf32>
      %cst_44 = arith.constant 0.899999976 : f32
      %65 = vector.broadcast %cst_44 : f32 to vector<8x1xf32>
      %66 = arith.mulf %65, %64 : vector<8x1xf32>
      %cst_45 = arith.constant 1.600000e+01 : f32
      %67 = vector.broadcast %cst_45 : f32 to vector<8x1xf32>
      %68 = arith.mulf %67, %58 : vector<8x1xf32>
      %c0_46 = arith.constant 0 : index
      %c0_47 = arith.constant 0 : index
      %69 = vector.load %arg9[%c0_46, %c0_47] : memref<8x1xf32, #tpu.memory_space<vmem>>, vector<8x1xf32>
      %70 = arith.subf %68, %69 : vector<8x1xf32>
      %cst_48 = arith.constant 6.250000e-03 : f32
      %71 = vector.broadcast %cst_48 : f32 to vector<8x1xf32>
      %72 = arith.mulf %71, %70 : vector<8x1xf32>
      %73 = arith.addf %66, %72 : vector<8x1xf32>
      %c8_i32 = arith.constant 8 : i32
      %74 = arith.muli %arg0, %c8_i32 : i32
      %75 = tpu.iota {dimensions = array<i32: 0>} : vector<8x1xi32>
      %76 = vector.broadcast %74 : i32 to vector<8x1xi32>
      %77 = arith.addi %76, %75 : vector<8x1xi32>
      %c8_i32_49 = arith.constant 8 : i32
      %78 = vector.broadcast %c8_i32_49 : i32 to vector<8x1xi32>
      %79 = arith.cmpi slt, %77, %78 : vector<8x1xi32>
      %cst_50 = arith.constant 0.000000e+00 : f32
      %80 = vector.broadcast %cst_50 : f32 to vector<8x1xf32>
      %81 = arith.select %79, %73, %80 : vector<8x1xi1>, vector<8x1xf32>
      %c0_51 = arith.constant 0 : index
      %c0_52 = arith.constant 0 : index
      %82 = vector.load %arg5[%c0_51, %c0_52] : memref<8x1xf32, #tpu.memory_space<vmem>>, vector<8x1xf32>
      tpu.vector_store %arg5[%c0_51, %c0_52], %81 {strides = array<i32>} : memref<8x1xf32, #tpu.memory_space<vmem>>, vector<8x1xf32>,
    } else {
    }
    return
  }
  func.func @transform_0(%arg0: i32, %arg1: i32) -> (i32, i32) {
    %c0_i32 = arith.constant 0 : i32
    %c0_i32_0 = arith.constant 0 : i32
    return %arg0, %c0_i32 : i32, i32
  }
  func.func @transform_1(%arg0: i32, %arg1: i32) -> (i32, i32) {
    %c0_i32 = arith.constant 0 : i32
    %c0_i32_0 = arith.constant 0 : i32
    return %c0_i32, %arg1 : i32, i32
  }
  func.func @transform_2(%arg0: i32, %arg1: i32) -> (i32, i32) {
    %c0_i32 = arith.constant 0 : i32
    %c0_i32_0 = arith.constant 0 : i32
    return %arg0, %c0_i32 : i32, i32
  }
  func.func @transform_3(%arg0: i32, %arg1: i32) -> (i32, i32) {
    %c0_i32 = arith.constant 0 : i32
    %c0_i32_0 = arith.constant 0 : i32
    return %arg0, %c0_i32 : i32, i32
  }
}

</mosaic_0001>

<llo_original>
// kernel: tpu_custom_call.1
$region0: #{tpu_custom_call.1}
  #allocation0 [shape = 'u32[]', space=smem, size = 0x4, offset = 0x4, fixed_abs, tag = 'smem constant byte address 0x4 - core index']
  #allocation1 [shape = 'u32[144,128]{1,0:T(1,128)}', space=vmem, size = 0x12000, scoped, tag = 'internal scratch']
  #allocation2 [shape = 'f32[8,32]{1,0:T(8,128)}', space=vmem, size = 0x1000, scoped, tag = 'scratch operand']
  #allocation3 [shape = 'f32[8,1]{1,0:T(8,128)}', space=vmem, size = 0x1000, scoped, tag = 'scratch operand']
  #allocation4 [shape = 'f32[8,1]{1,0:T(8,128)}', space=vmem, size = 0x1000, scoped, tag = 'scratch operand']
  #allocation5 [shape = 'f32[8,1]{1,0:T(8,128)}', space=vmem, size = 0x1000, scoped, tag = 'scratch operand']
  #allocation6 [shape = 'f32[8,1]{1,0:T(8,128)}', space=vmem, size = 0x1000, scoped, tag = 'scratch operand']
  #allocation7 [shape = 'f32[8,1]{1,0:T(8,128)}', space=vmem, size = 0x1000, scoped, tag = 'scratch operand']
  #allocation8 [shape = 'f32[8,1]{1,0:T(8,128)}', space=vmem, size = 0x1000, scoped, tag = 'scratch operand']
  %s0 = inlined_call_operand.vmem [shape: f32[8,32], index: 0, kind: input, shape index: {}]
  %s1 = inlined_call_operand.vmem [shape: f32[32,16], index: 1, kind: input, shape index: {}]
  %s2 = inlined_call_operand.vmem [shape: s32[8,1], index: 2, kind: input, shape index: {}]
  %s3 = inlined_call_operand.vmem [shape: f32[8,1], index: 3, kind: output, shape index: {}]
  %s4 = sld [smem:[#allocation0]]
  $region30: #{tpu_custom_call.1} parent=0
    _
  %s6 = ssub.s32 1, %s4
  %s7 = scalar_select 0, %s6, %s4
  // Predicated region
  $region2: #{tpu_custom_call.1} parent=0 // pred_check
    _
  $region3: #{tpu_custom_call.1} parent=0 // pred_check_branch
    %9 = sbr.rel (0) target = $region5
  $region4: #{tpu_custom_call.1} parent=0 // pred_region
    _
  $region5: #{tpu_custom_call.1} parent=0 // pred_fallthru
    _
  // Predicated region
  $region6: #{tpu_custom_call.1} parent=0 // pred_check
    _
  $region7: #{tpu_custom_call.1} parent=0 // pred_check_branch
    %11 = sbr.rel (0) target = $region9
  $region8: #{tpu_custom_call.1} parent=0 // pred_region
    _
  $region9: #{tpu_custom_call.1} parent=0 // pred_fallthru
    _
  // Predicated region
  $region10: #{tpu_custom_call.1} parent=0 // pred_check
    _
  $region11: #{tpu_custom_call.1} parent=0 // pred_check_branch
    %13 = sbr.rel (0) target = $region13
  $region12: #{tpu_custom_call.1} parent=0 // pred_region
    _
  $region13: #{tpu_custom_call.1} parent=0 // pred_fallthru
    _
  %p14 = scmp.eq.s32.totalorder 0, 0
  // Predicated region
  $region14: #{tpu_custom_call.1} parent=0 // pred_check
    %p15 = pneg %p14
  $region15: #{tpu_custom_call.1} parent=0 // pred_check_branch
    %17 = sbr.rel (%p15) target = $region17
  $region16: #{tpu_custom_call.1} parent=0 // pred_region
    %v18 = vld [vmem:[%s0] sm:$0xff]
    %v19 = vmul.f32 %v18, %v18
    %vm20 = vcmask 261120
    %v21 = vsel %vm20, %v19, 0.0
    %22 = vadd.xlane.f32.xlu0 %v21
    %v23 = vpop.xlane.xlu0 %22
    %v24 = vrsqrt.pop %v23
    %v25 = vmul.f32 %v23, %v24
    %vm26 = vcmp.eq.f32.partialorder %v23, inf
    %v27 = vsel %vm26, %v23, %v25
    %vm28 = vcmp.eq.f32.partialorder %v23, 0.0
    %v29 = vand.u32 %v23, 2147483648
    %v30 = vsel %vm28, %v29, %v27
    %v31 = vmax.f32 %v30, 1e-12
    %v32 = vrcp.pop %v31
    %v33 = vmul.f32 %v18, %v32
    %34 = vst.msk [vmem:[#allocation2] sm:$0xff] %vm20, %v33
    %vm35 = vcmask 7168
    %36 = vst.msk [vmem:[#allocation3] sm:$0xff] %vm35, -1e+30
    %37 = vst.msk [vmem:[#allocation4] sm:$0xff] %vm35, 0.0
    %38 = vst.msk [vmem:[#allocation5] sm:$0xff] %vm35, 0.0
    %39 = vst.msk [vmem:[#allocation6] sm:$0xff] %vm35, 0.0
    %40 = vst.msk [vmem:[#allocation7] sm:$0xff] %vm35, -1e+30
    %41 = vst.msk [vmem:[#allocation8] sm:$0xff] %vm35, 0.0
  $region17: #{tpu_custom_call.1} parent=0 // pred_fallthru
    _
  %v42 = vld [vmem:[#allocation2] sm:$0xff]
  %v43 = vld [vmem:[%s1] sm:$0xff]
  %v44 = vld [vmem:[%s1 + $0x8] sm:$0xff]
  %v45 = vld [vmem:[%s1 + $0x10] sm:$0xff]
  %v46 = vld [vmem:[%s1 + $0x18] sm:$0xff]
  %vm47 = vcmask 261120
  %v49 = vsel %vm47, %v42, 0
  %51 = vmatprep.subr.mxu0 0.0
  %52 = vmatpush1.msra.mxu0 %v43
  %53 = vmatprep.subr.mxu0 0.0
  %54 = vmatpush1.msra.mxu0 %v44
  %55 = vmatprep.subr.mxu0 0.0
  %56 = vmatpush1.msra.mxu0 %v45
  %57 = vmatprep.subr.mxu0 0.0
  %58 = vmatpush1.msra.mxu0 %v46
  %59 = vmatprep.subr.mxu0 0.0
  %60 = vmatpush1.msra.mxu0 0.0
  %61 = vmatprep.subr.mxu0 0.0
  %62 = vmatpush1.msra.mxu0 0.0
  %63 = vmatprep.subr.mxu0 0.0
  %64 = vmatpush1.msra.mxu0 0.0
  %65 = vmatprep.subr.mxu0 0.0
  %66 = vmatpush1.msra.mxu0 0.0
  %67 = vmatprep.subr.mxu0 0.0
  %68 = vmatpush1.msra.mxu0 0.0
  %69 = vmatprep.subr.mxu0 0.0
  %70 = vmatpush1.msra.mxu0 0.0
  %71 = vmatprep.subr.mxu0 0.0
  %72 = vmatpush1.msra.mxu0 0.0
  %73 = vmatprep.subr.mxu0 0.0
  %74 = vmatpush1.msra.mxu0 0.0
  %75 = vmatprep.subr.mxu0 0.0
  %76 = vmatpush1.msra.mxu0 0.0
  %77 = vmatprep.subr.mxu0 0.0
  %78 = vmatpush1.msra.mxu0 0.0
  %79 = vmatprep.subr.mxu0 0.0
  %80 = vmatpush1.msra.mxu0 0.0
  %81 = vmatprep.subr.mxu0 0.0
  %82 = vmatpush1.msra.mxu0 0.0
  %83 = vmatprep.subr.mxu0 0.0
  %84 = vmatpush1.msra.mxu0 0.0
  %85 = vmatprep.subr.mxu0 0.0
  %86 = vmatpush1.msra.mxu0 0.0
  %87 = vmatprep.subr.mxu0 0.0
  %88 = vmatpush1.msra.mxu0 0.0
  %89 = vmatprep.subr.mxu0 0.0
  %90 = vmatpush1.msra.mxu0 0.0
  %91 = vmatprep.subr.mxu0 0.0
  %92 = vmatpush1.msra.mxu0 0.0
  %93 = vmatprep.subr.mxu0 0.0
  %94 = vmatpush1.msra.mxu0 0.0
  %95 = vmatprep.subr.mxu0 0.0
  %96 = vmatpush1.msra.mxu0 0.0
  %97 = vmatprep.subr.mxu0 0.0
  %98 = vmatpush1.msra.mxu0 0.0
  %99 = vmatprep.subr.mxu0 0.0
  %100 = vmatpush1.msra.mxu0 0.0
  %101 = vmatprep.subr.mxu0 0.0
  %102 = vmatpush1.msra.mxu0 0.0
  %103 = vmatprep.subr.mxu0 0.0
  %104 = vmatpush1.msra.mxu0 0.0
  %105 = vmatprep.subr.mxu0 0.0
  %106 = vmatpush1.msra.mxu0 0.0
  %107 = vmatprep.subr.mxu0 0.0
  %108 = vmatpush1.msra.mxu0 0.0
  %109 = vmatprep.subr.mxu0 0.0
  %110 = vmatpush1.msra.mxu0 0.0
  %111 = vmatprep.subr.mxu0 0.0
  %112 = vmatpush1.msra.mxu0 0.0
  %113 = vmatprep.subr.mxu0 0.0
  %114 = vmatpush1.msra.mxu0 0.0
  %115 = vmatprep.mubr.f32.mxu0 0.0
  %116 = vmatmul.mubr.f32.gmra.mrb[0].mxu0 %v49
  %v117 = vpop.f32.mrb[0].mxu0
  %v118 = vadd.f32 0.0, %v117
  %v119 = vpop.f32.mrb[0].mxu0
  %120 = vdwg.mxu0
  %s121 = smul.u32 0, 16
  %v122 = vlaneseq
  %v123 = vand.u32 %v122, 127
  %v124 = vstv %s121
  %v125 = vadd.s32 %v124, %v123
  %vm126 = vcmp.lt.s32.totalorder %v125, 16
  %v127 = vld [vmem:[%s2] sm:$0xff]
  %128 = vset.pattern.permute.xlu0 0
  %129 = vperm.xlu0 %128, %v127
  %v130 = vpop.permute.xlu0 %129
  %vm131 = vcmp.eq.s32.totalorder %v125, %v130
  %v132 = vld [vmem:[#allocation6] sm:$0xff]
  %v133 = vsel %vm131, %v118, 0.0
  %vm134 = vcmask 130048
  %v135 = vsel %vm134, %v133, 0.0
  %136 = vadd.xlane.f32.xlu0 %v135
  %v137 = vpop.xlane.xlu0 %136
  %v138 = vadd.f32 %v132, %v137
  %vm139 = vcmask 7168
  %140 = vst.msk [vmem:[#allocation6] sm:$0xff] %vm139, %v138
  %v141 = vmul.f32 %v118, 20.0
  %v142 = vsel %vm126, %v141, -1e+30
  %v143 = vld [vmem:[#allocation3] sm:$0xff]
  %v144 = vsel %vm134, %v142, -inf
  %145 = vmax.xlane.f32.xlu0 %v144
  %v146 = vpop.xlane.xlu0 %145
  %v147 = vmax.f32 %v143, %v146
  %149 = vset.pattern.permute.xlu0 0
  %150 = vperm.xlu0 %149, %v147
  %v151 = vpop.permute.xlu0 %150
  %v153 = vsub.f32 %v142, %v151
  %v154 = vmul.f32 %v153, 1.442695
  %v155 = vpow.pop %v154
  %v156 = vsel %vm126, %v155, 0.0
  %v157 = vsub.f32 %v143, %v147
  %v158 = vmul.f32 %v157, 1.442695
  %v159 = vpow.pop %v158
  %v160 = vld [vmem:[#allocation4] sm:$0xff]
  %v161 = vmul.f32 %v159, %v160
  %v162 = vsel %vm134, %v156, 0.0
  %163 = vadd.xlane.f32.xlu0 %v162
  %v164 = vpop.xlane.xlu0 %163
  %v165 = vadd.f32 %v161, %v164
  %166 = vst.msk [vmem:[#allocation4] sm:$0xff] %vm139, %v165
  %v167 = vld [vmem:[#allocation5] sm:$0xff]
  %v168 = vsel %vm126, %v141, 0.0
  %v169 = vsel %vm134, %v168, 0.0
  %170 = vadd.xlane.f32.xlu0 %v169
  %v171 = vpop.xlane.xlu0 %170
  %v172 = vadd.f32 %v167, %v171
  %173 = vst.msk [vmem:[#allocation5] sm:$0xff] %vm139, %v172
  %174 = vst.msk [vmem:[#allocation3] sm:$0xff] %vm139, %v147
  // Predicated region
  $region18: #{tpu_custom_call.1} parent=0 // pred_check
    %p175 = pneg %p14
  $region19: #{tpu_custom_call.1} parent=0 // pred_check_branch
    %177 = sbr.rel (%p175) target = $region21
  $region20: #{tpu_custom_call.1} parent=0 // pred_region
    %v178 = vld [vmem:[#allocation3] sm:$0xff]
    %v179 = vld [vmem:[#allocation4] sm:$0xff]
    %v180 = vlog2.pop %v179
    %v181 = vmul.f32 %v180, 0.6931472
    %v182 = vadd.f32 %v178, %v181
    %v183 = vld [vmem:[#allocation6] sm:$0xff]
    %v184 = vmul.f32 %v183, 20.0
    %v185 = vsub.f32 %v182, %v184
    %v186 = vmul.f32 %v185, 0.9
    %v187 = vmul.f32 %v182, 16.0
    %v188 = vld [vmem:[#allocation5] sm:$0xff]
    %v189 = vsub.f32 %v187, %v188
    %v190 = vmul.f32 %v189, 0.00625
    %v191 = vadd.f32 %v186, %v190
    %s192 = smul.u32 0, 8
    %v193 = vlaneseq
    %v194 = vshrl.u32 %v193, 7
    %v195 = vstv %s192
    %v196 = vadd.s32 %v195, %v194
    %vm197 = vcmp.lt.s32.totalorder %v196, 8
    %v198 = vsel %vm197, %v191, 0.0
    %199 = vst.msk [vmem:[%s3] sm:$0xff] %vm139, %v198
  $region21: #{tpu_custom_call.1} parent=0 // pred_fallthru
    _
  // Predicated region
  $region22: #{tpu_custom_call.1} parent=0 // pred_check
    _
  $region23: #{tpu_custom_call.1} parent=0 // pred_check_branch
    %201 = sbr.rel (0) target = $region25
  $region24: #{tpu_custom_call.1} parent=0 // pred_region
    _
  $region25: #{tpu_custom_call.1} parent=0 // pred_fallthru
    _
  // Predicated region
  $region26: #{tpu_custom_call.1} parent=0 // pred_check
    _
  $region27: #{tpu_custom_call.1} parent=0 // pred_check_branch
    %203 = sbr.rel (0) target = $region29
  $region28: #{tpu_custom_call.1} parent=0 // pred_region
    _
  $region29: #{tpu_custom_call.1} parent=0 // pred_fallthru
    _

</llo_original>
